<compile_context>
chip_gen: v5e
topology: v5e:2x2
jax: 0.10.0
libtpu: 0.0.40
codegen_flags: <defaults>
</compile_context>

<pallas_src>
import functools

import jax
import jax.numpy as jnp
import numpy as np
from jax.experimental import pallas as pl
from jax.experimental.pallas import tpu as pltpu

LANE = 128
TILE_ROWS_MAX = 2048  # (2048, 128) f32 tile = 1 MiB per input


def _bce_loss_kernel(x_ref, y_ref, w_ref, out_ref, sum_sc, cnt_sc, *,
                     total_rows):
    i = pl.program_id(0)
    tile_rows = x_ref.shape[0]  # static

    @pl.when(i == 0)
    def _():
        sum_sc[...] = jnp.zeros_like(sum_sc)
        cnt_sc[...] = jnp.zeros_like(cnt_sc)

    x = x_ref[...].astype(jnp.float32)
    y = y_ref[...].astype(jnp.float32)
    w = w_ref[...].astype(jnp.float32)

    # Numerically-stable BCE with logits (same formula torch uses):
    #   max(x, 0) - x*y + log(1 + exp(-|x|))
    loss = jnp.maximum(x, 0.0) - x * y + jnp.log1p(jnp.exp(-jnp.abs(x)))

    # Mask rows past the true row count (last block may extend OOB and read
    # garbage).  Lane-padding inside valid rows carries weight 0 and is
    # therefore already harmless for both sum and count.
    row_ids = i * tile_rows + jax.lax.broadcasted_iota(jnp.int32, x.shape, 0)
    valid = row_ids < total_rows

    weighted = jnp.where(valid, w * loss, 0.0)
    nonzero = jnp.where(valid & (w != 0.0), 1.0, 0.0)

    # Steady-state accumulation stays on the VPU: fold the tile down to an
    # (8, 128) partial without any cross-lane reduce.
    sum_sc[...] += weighted.reshape(tile_rows // 8, 8, LANE).sum(axis=0)
    cnt_sc[...] += nonzero.reshape(tile_rows // 8, 8, LANE).sum(axis=0)

    @pl.when(i == pl.num_programs(0) - 1)
    def _():
        total = jnp.sum(sum_sc[...])
        count = jnp.sum(cnt_sc[...])
        out_ref[...] = (total / count).reshape(1, 1)


def _to_lane_dense(a, rows, n):
    """Flatten to (rows, 128).  Free when n % 128 == 0 (pure reshape)."""
    flat = jnp.ravel(a)
    pad = rows * LANE - n
    if pad:
        # Only the (< 128-element) ragged tail needs zeros; padded weights are
        # 0 so they contribute to neither sum nor count.
        flat = jnp.pad(flat, (0, pad))
    return flat.reshape(rows, LANE)


def pixelwise_bce_with_logits_loss(inputs, target, weights):
    """inputs/target/weights: NCHW arrays of identical shape.

    Returns the scalar masked-mean weighted BCE-with-logits loss.
    """
    assert inputs.shape == target.shape == weights.shape
    n = int(np.prod(inputs.shape))
    rows = -(-n // LANE)                              # ceil(n / 128)

    x2 = _to_lane_dense(inputs, rows, n)
    y2 = _to_lane_dense(target, rows, n)
    w2 = _to_lane_dense(weights, rows, n)

    # Biggest sublane-aligned tile up to TILE_ROWS_MAX (clamped for tiny inputs).
    tile_rows = min(TILE_ROWS_MAX, -(-rows // 8) * 8)
    grid = (pl.cdiv(rows, tile_rows),)
    tile_spec = pl.BlockSpec((tile_rows, LANE), lambda i: (i, 0))

    kernel = functools.partial(_bce_loss_kernel, total_rows=rows)

    out = pl.pallas_call(
        kernel,
        out_shape=jax.ShapeDtypeStruct((1, 1), jnp.float32),
        grid=grid,
        in_specs=[tile_spec, tile_spec, tile_spec],
        out_specs=pl.BlockSpec((1, 1), lambda i: (0, 0)),
        scratch_shapes=[
            pltpu.VMEM((8, LANE), jnp.float32),   # running weighted-loss sum
            pltpu.VMEM((8, LANE), jnp.float32),   # running nonzero count
        ],
        compiler_params=pltpu.CompilerParams(
            dimension_semantics=("arbitrary",),   # sequential reduction axis
        ),
    )(x2, y2, w2)
    return out[0, 0]


def _reference(inputs, target, weights):
    x = inputs.astype(jnp.float32)
    y = target.astype(jnp.float32)
    w = weights.astype(jnp.float32)
    loss = jnp.maximum(x, 0.0) - x * y + jnp.log1p(jnp.exp(-jnp.abs(x)))
    weighted = w * loss
    mask = w != 0.0
    return jnp.sum(jnp.where(mask, weighted, 0.0)) / jnp.sum(mask)


if __name__ == "__main__":
    key = jax.random.PRNGKey(0)
    k1, k2, k3, k4 = jax.random.split(key, 4)

    shape = (2, 4, 16, 16)  # NCHW
    inputs = jax.random.normal(k1, shape, dtype=jnp.float32)
    target = jax.random.uniform(k2, shape, dtype=jnp.float32)
    # weights with a mix of zeros and positive values (exercises the mask).
    w_mask = (jax.random.uniform(k3, shape) > 0.3).astype(jnp.float32)
    weights = w_mask * jax.random.uniform(k4, shape, minval=0.5, maxval=2.0)

    out = pixelwise_bce_with_logits_loss(inputs, target, weights)
    out = jax.block_until_ready(out)

    ref = _reference(inputs, target, weights)
    np.testing.assert_allclose(np.asarray(out), np.asarray(ref),
                               rtol=1e-5, atol=1e-6)
    print("KERNEL_OK")
</pallas_src>

<mosaic_0001>
module attributes {stable_mosaic.version = 11 : i64} {
  func.func @_bce_loss_kernel(%arg0: i32, %arg1: memref<16x128xf32, #tpu.memory_space<vmem>>, %arg2: memref<16x128xf32, #tpu.memory_space<vmem>>, %arg3: memref<16x128xf32, #tpu.memory_space<vmem>>, %arg4: memref<1x1xf32, #tpu.memory_space<vmem>>, %arg5: memref<8x128xf32, #tpu.memory_space<vmem>>, %arg6: memref<8x128xf32, #tpu.memory_space<vmem>>) attributes {dimension_semantics = [#tpu.dimension_semantics<arbitrary>], iteration_bounds = array<i64: 1>, scalar_prefetch = 0 : i64, scratch_operands = 2 : i64, tpu.core_type = #tpu.core_type<tc>, window_params = [{transform_indices = @transform_0, window_bounds = array<i64: 16, 128>}, {transform_indices = @transform_1, window_bounds = array<i64: 16, 128>}, {transform_indices = @transform_2, window_bounds = array<i64: 16, 128>}, {pipeline_mode = #tpu.pipeline_mode<synchronous>, transform_indices = @transform_3, window_bounds = array<i64: 1, 1>}]} {
    %c0_i32 = arith.constant 0 : i32
    %0 = arith.cmpi eq, %arg0, %c0_i32 : i32
    %1 = arith.extui %0 : i1 to i32
    %c0_i32_0 = arith.constant 0 : i32
    %2 = arith.cmpi ne, %1, %c0_i32_0 : i32
    scf.if %2 {
      %cst_24 = arith.constant 0.000000e+00 : f32
      %44 = vector.broadcast %cst_24 : f32 to vector<8x128xf32>
      %c0_25 = arith.constant 0 : index
      %c0_26 = arith.constant 0 : index
      %45 = vector.load %arg5[%c0_25, %c0_26] : memref<8x128xf32, #tpu.memory_space<vmem>>, vector<8x128xf32>
      tpu.vector_store %arg5[%c0_25, %c0_26], %44 {strides = array<i32>} : memref<8x128xf32, #tpu.memory_space<vmem>>, vector<8x128xf32>,
      %cst_27 = arith.constant 0.000000e+00 : f32
      %46 = vector.broadcast %cst_27 : f32 to vector<8x128xf32>
      %c0_28 = arith.constant 0 : index
      %c0_29 = arith.constant 0 : index
      %47 = vector.load %arg6[%c0_28, %c0_29] : memref<8x128xf32, #tpu.memory_space<vmem>>, vector<8x128xf32>
      tpu.vector_store %arg6[%c0_28, %c0_29], %46 {strides = array<i32>} : memref<8x128xf32, #tpu.memory_space<vmem>>, vector<8x128xf32>,
    } else {
    }
    %c0 = arith.constant 0 : index
    %c0_1 = arith.constant 0 : index
    %3 = vector.load %arg1[%c0, %c0_1] : memref<16x128xf32, #tpu.memory_space<vmem>>, vector<16x128xf32>
    %c0_2 = arith.constant 0 : index
    %c0_3 = arith.constant 0 : index
    %4 = vector.load %arg2[%c0_2, %c0_3] : memref<16x128xf32, #tpu.memory_space<vmem>>, vector<16x128xf32>
    %c0_4 = arith.constant 0 : index
    %c0_5 = arith.constant 0 : index
    %5 = vector.load %arg3[%c0_4, %c0_5] : memref<16x128xf32, #tpu.memory_space<vmem>>, vector<16x128xf32>
    %cst = arith.constant 0.000000e+00 : f32
    %6 = vector.broadcast %cst : f32 to vector<16x128xf32>
    %7 = arith.maximumf %3, %6 : vector<16x128xf32>
    %8 = arith.mulf %3, %4 : vector<16x128xf32>
    %9 = arith.subf %7, %8 : vector<16x128xf32>
    %10 = math.absf %3 : vector<16x128xf32>
    %cst_6 = arith.constant 0.000000e+00 : f32
    %11 = vector.broadcast %cst_6 : f32 to vector<16x128xf32>
    %12 = arith.subf %11, %10 : vector<16x128xf32>
    %13 = math.exp %12 : vector<16x128xf32>
    %14 = math.log1p %13 : vector<16x128xf32>
    %15 = arith.addf %9, %14 : vector<16x128xf32>
    %c16_i32 = arith.constant 16 : i32
    %16 = arith.muli %arg0, %c16_i32 : i32
    %17 = tpu.iota {dimensions = array<i32: 0>} : vector<16x128xi32>
    %18 = vector.broadcast %16 : i32 to vector<16x128xi32>
    %19 = arith.addi %18, %17 : vector<16x128xi32>
    %c16_i32_7 = arith.constant 16 : i32
    %20 = vector.broadcast %c16_i32_7 : i32 to vector<16x128xi32>
    %21 = arith.cmpi slt, %19, %20 : vector<16x128xi32>
    %22 = arith.mulf %5, %15 : vector<16x128xf32>
    %cst_8 = arith.constant 0.000000e+00 : f32
    %23 = vector.broadcast %cst_8 : f32 to vector<16x128xf32>
    %24 = arith.select %21, %22, %23 : vector<16x128xi1>, vector<16x128xf32>
    %cst_9 = arith.constant 0.000000e+00 : f32
    %25 = vector.broadcast %cst_9 : f32 to vector<16x128xf32>
    %26 = arith.cmpf one, %5, %25 : vector<16x128xf32>
    %27 = arith.andi %21, %26 : vector<16x128xi1>
    %cst_10 = arith.constant 1.000000e+00 : f32
    %cst_11 = arith.constant 0.000000e+00 : f32
    %28 = vector.broadcast %cst_10 : f32 to vector<16x128xf32>
    %29 = vector.broadcast %cst_11 : f32 to vector<16x128xf32>
    %30 = arith.select %27, %28, %29 : vector<16x128xi1>, vector<16x128xf32>
    %c0_12 = arith.constant 0 : index
    %c0_13 = arith.constant 0 : index
    %31 = vector.load %arg5[%c0_12, %c0_13] : memref<8x128xf32, #tpu.memory_space<vmem>>, vector<8x128xf32>
    %32 = vector.shape_cast %24 : vector<16x128xf32> to vector<2x8x128xf32>
    %cst_14 = arith.constant dense<0.000000e+00> : vector<8x128xf32>
    %33 = vector.multi_reduction <add>, %32, %cst_14 [0] : vector<2x8x128xf32> to vector<8x128xf32>
    %34 = arith.addf %31, %33 : vector<8x128xf32>
    %c0_15 = arith.constant 0 : index
    %c0_16 = arith.constant 0 : index
    %35 = vector.load %arg5[%c0_15, %c0_16] : memref<8x128xf32, #tpu.memory_space<vmem>>, vector<8x128xf32>
    tpu.vector_store %arg5[%c0_15, %c0_16], %34 {strides = array<i32>} : memref<8x128xf32, #tpu.memory_space<vmem>>, vector<8x128xf32>,
    %c0_17 = arith.constant 0 : index
    %c0_18 = arith.constant 0 : index
    %36 = vector.load %arg6[%c0_17, %c0_18] : memref<8x128xf32, #tpu.memory_space<vmem>>, vector<8x128xf32>
    %37 = vector.shape_cast %30 : vector<16x128xf32> to vector<2x8x128xf32>
    %cst_19 = arith.constant dense<0.000000e+00> : vector<8x128xf32>
    %38 = vector.multi_reduction <add>, %37, %cst_19 [0] : vector<2x8x128xf32> to vector<8x128xf32>
    %39 = arith.addf %36, %38 : vector<8x128xf32>
    %c0_20 = arith.constant 0 : index
    %c0_21 = arith.constant 0 : index
    %40 = vector.load %arg6[%c0_20, %c0_21] : memref<8x128xf32, #tpu.memory_space<vmem>>, vector<8x128xf32>
    tpu.vector_store %arg6[%c0_20, %c0_21], %39 {strides = array<i32>} : memref<8x128xf32, #tpu.memory_space<vmem>>, vector<8x128xf32>,
    %c0_i32_22 = arith.constant 0 : i32
    %41 = arith.cmpi eq, %arg0, %c0_i32_22 : i32
    %42 = arith.extui %41 : i1 to i32
    %c0_i32_23 = arith.constant 0 : i32
    %43 = arith.cmpi ne, %42, %c0_i32_23 : i32
    scf.if %43 {
      %c0_24 = arith.constant 0 : index
      %c0_25 = arith.constant 0 : index
      %44 = vector.load %arg5[%c0_24, %c0_25] : memref<8x128xf32, #tpu.memory_space<vmem>>, vector<8x128xf32>
      %45 = vector.shape_cast %44 : vector<8x128xf32> to vector<1x8x128xf32>
      %cst_26 = arith.constant dense<0.000000e+00> : vector<1xf32>
      %46 = vector.multi_reduction <add>, %45, %cst_26 [1, 2] : vector<1x8x128xf32> to vector<1xf32>
      %47 = vector.shape_cast %46 : vector<1xf32> to vector<1x1x1xf32>
      %48 = vector.extract %47[0, 0, 0] : f32 from vector<1x1x1xf32>
      %c0_27 = arith.constant 0 : index
      %c0_28 = arith.constant 0 : index
      %49 = vector.load %arg6[%c0_27, %c0_28] : memref<8x128xf32, #tpu.memory_space<vmem>>, vector<8x128xf32>
      %50 = vector.shape_cast %49 : vector<8x128xf32> to vector<1x8x128xf32>
      %cst_29 = arith.constant dense<0.000000e+00> : vector<1xf32>
      %51 = vector.multi_reduction <add>, %50, %cst_29 [1, 2] : vector<1x8x128xf32> to vector<1xf32>
      %52 = vector.shape_cast %51 : vector<1xf32> to vector<1x1x1xf32>
      %53 = vector.extract %52[0, 0, 0] : f32 from vector<1x1x1xf32>
      %54 = arith.divf %48, %53 : f32
      %55 = vector.broadcast %54 : f32 to vector<1x1xf32>
      %c0_30 = arith.constant 0 : index
      %c0_31 = arith.constant 0 : index
      %56 = vector.load %arg4[%c0_30, %c0_31] : memref<1x1xf32, #tpu.memory_space<vmem>>, vector<1x1xf32>
      tpu.vector_store %arg4[%c0_30, %c0_31], %55 {strides = array<i32>} : memref<1x1xf32, #tpu.memory_space<vmem>>, vector<1x1xf32>,
    } else {
    }
    return
  }
  func.func @transform_0(%arg0: i32) -> (i32, i32) {
    %c0_i32 = arith.constant 0 : i32
    %c0_i32_0 = arith.constant 0 : i32
    return %arg0, %c0_i32 : i32, i32
  }
  func.func @transform_1(%arg0: i32) -> (i32, i32) {
    %c0_i32 = arith.constant 0 : i32
    %c0_i32_0 = arith.constant 0 : i32
    return %arg0, %c0_i32 : i32, i32
  }
  func.func @transform_2(%arg0: i32) -> (i32, i32) {
    %c0_i32 = arith.constant 0 : i32
    %c0_i32_0 = arith.constant 0 : i32
    return %arg0, %c0_i32 : i32, i32
  }
  func.func @transform_3(%arg0: i32) -> (i32, i32) {
    %c0_i32 = arith.constant 0 : i32
    %c0_i32_0 = arith.constant 0 : i32
    %c0_i32_1 = arith.constant 0 : i32
    return %c0_i32, %c0_i32_0 : i32, i32
  }
}

</mosaic_0001>

<llo_original>
// kernel: tpu_custom_call.1
$region0: #{tpu_custom_call.1}
  #allocation0 [shape = 'u32[]', space=smem, size = 0x4, offset = 0x4, fixed_abs, tag = 'smem constant byte address 0x4 - core index']
  #allocation1 [shape = 'u32[72,128]{1,0:T(1,128)}', space=vmem, size = 0x9000, scoped, tag = 'internal scratch']
  #allocation2 [shape = 'f32[8,128]{1,0:T(8,128)}', space=vmem, size = 0x1000, scoped, tag = 'scratch operand']
  #allocation3 [shape = 'f32[8,128]{1,0:T(8,128)}', space=vmem, size = 0x1000, scoped, tag = 'scratch operand']
  %s0 = inlined_call_operand.hbm [shape: f32[16,128], index: 0, kind: input, shape index: {}]
  %s1 = inlined_call_operand.hbm [shape: f32[16,128], index: 1, kind: input, shape index: {}]
  %s2 = inlined_call_operand.hbm [shape: f32[16,128], index: 2, kind: input, shape index: {}]
  %s3 = inlined_call_operand.hbm [shape: f32[1,1], index: 3, kind: output, shape index: {}]
  %s4 = sld [smem:[#allocation0]]
  $region42: #{tpu_custom_call.1} parent=0
    _
  %s6 = ssub.s32 1, %s4
  %s7 = scalar_select 0, %s6, %s4
  $region1: #{tpu_custom_call.1} parent=0
    #allocation4 [shape = 'u8[8192]{0}', space=vmem, size = 0x2000, scoped, tag = 'input window, operand 0, single buffered']
    #allocation5 [shape = 's32[1]{0}', space=sflag, size = 0x4, scoped, tag = 'scoped memory for tpu_custom_call.1']
    #allocation6 [shape = 's32[1]{0}', space=sflag, size = 0x4, scoped, tag = 'scoped memory for tpu_custom_call.1']
    #allocation7 [shape = 'u8[8192]{0}', space=vmem, size = 0x2000, scoped, tag = 'input window, operand 1, single buffered']
    #allocation8 [shape = 's32[1]{0}', space=sflag, size = 0x4, scoped, tag = 'scoped memory for tpu_custom_call.1']
    #allocation9 [shape = 'u8[8192]{0}', space=vmem, size = 0x2000, scoped, tag = 'input window, operand 2, single buffered']
    #allocation10 [shape = 'u8[512]{0}', space=vmem, size = 0x400, scoped, tag = 'output window, operand 0, single buffered']
    %8 = vsyncpa [#allocation5], 0
    %9 = vsyncpa [#allocation8], 0
    %10 = vsyncpa [#allocation6], 0
    // Predicated region
    $region2: #{tpu_custom_call.1} parent=1 // pred_check
      _
    $region3: #{tpu_custom_call.1} parent=1 // pred_check_branch
      %12 = sbr.rel (0) target = $region5
    $region4: #{tpu_custom_call.1} parent=1 // pred_region
      %14 = vsyncadd [#allocation5], 0
      %s15 = sshll.u32 %s0, 4
      %s16 = int_to_ptr.hbm [resolvable:$true] %s15
      %s17 = sshll.u32 [#allocation4], 4
      %s18 = int_to_ptr.vmem [resolvable:$true] %s17
      %23 = dma.hbm_to_vmem [thread:$0]  %s16, 256, %s18, [#allocation5], 128, 128, 8
    $region5: #{tpu_custom_call.1} parent=1 // pred_fallthru
      _
    // Predicated region
    $region6: #{tpu_custom_call.1} parent=1 // pred_check
      _
    $region7: #{tpu_custom_call.1} parent=1 // pred_check_branch
      %25 = sbr.rel (0) target = $region9
    $region8: #{tpu_custom_call.1} parent=1 // pred_region
      %27 = vsyncadd [#allocation8], 0
      %s28 = sshll.u32 %s1, 4
      %s29 = int_to_ptr.hbm [resolvable:$true] %s28
      %s30 = sshll.u32 [#allocation7], 4
      %s31 = int_to_ptr.vmem [resolvable:$true] %s30
      %36 = dma.hbm_to_vmem [thread:$0]  %s29, 256, %s31, [#allocation8], 128, 128, 8
    $region9: #{tpu_custom_call.1} parent=1 // pred_fallthru
      _
    // Predicated region
    $region10: #{tpu_custom_call.1} parent=1 // pred_check
      _
    $region11: #{tpu_custom_call.1} parent=1 // pred_check_branch
      %38 = sbr.rel (0) target = $region13
    $region12: #{tpu_custom_call.1} parent=1 // pred_region
      %40 = vsyncadd [#allocation8], 0
      %s41 = sshll.u32 %s2, 4
      %s42 = int_to_ptr.hbm [resolvable:$true] %s41
      %s43 = sshll.u32 [#allocation9], 4
      %s44 = int_to_ptr.vmem [resolvable:$true] %s43
      %49 = dma.hbm_to_vmem [thread:$0]  %s42, 256, %s44, [#allocation8], 128, 128, 8
    $region13: #{tpu_custom_call.1} parent=1 // pred_fallthru
      _
    // Predicated region
    $region14: #{tpu_custom_call.1} parent=1 // pred_check
      _
    $region15: #{tpu_custom_call.1} parent=1 // pred_check_branch
      %51 = sbr.rel (0) target = $region17
    $region16: #{tpu_custom_call.1} parent=1 // pred_region
      %53 = dma.done [#allocation5], 256
    $region17: #{tpu_custom_call.1} parent=1 // pred_fallthru
      _
    // Predicated region
    $region18: #{tpu_custom_call.1} parent=1 // pred_check
      _
    $region19: #{tpu_custom_call.1} parent=1 // pred_check_branch
      %55 = sbr.rel (0) target = $region21
    $region20: #{tpu_custom_call.1} parent=1 // pred_region
      %57 = dma.done [#allocation8], 256
    $region21: #{tpu_custom_call.1} parent=1 // pred_fallthru
      _
    // Predicated region
    $region22: #{tpu_custom_call.1} parent=1 // pred_check
      _
    $region23: #{tpu_custom_call.1} parent=1 // pred_check_branch
      %59 = sbr.rel (0) target = $region25
    $region24: #{tpu_custom_call.1} parent=1 // pred_region
      %61 = dma.done [#allocation8], 256
    $region25: #{tpu_custom_call.1} parent=1 // pred_fallthru
      _
    %p62 = scmp.eq.s32.totalorder 0, 0
    // Predicated region
    $region26: #{tpu_custom_call.1} parent=1 // pred_check
      %p63 = pneg %p62
    $region27: #{tpu_custom_call.1} parent=1 // pred_check_branch
      %65 = sbr.rel (%p63) target = $region29
    $region28: #{tpu_custom_call.1} parent=1 // pred_region
      %66 = vst [vmem:[#allocation2] sm:$0xff] 0.0
      %67 = vst [vmem:[#allocation3] sm:$0xff] 0.0
    $region29: #{tpu_custom_call.1} parent=1 // pred_fallthru
      _
    %v68 = vld [vmem:[#allocation4] sm:$0xff]
    %v69 = vld [vmem:[#allocation4 + $0x8] sm:$0xff]
    %v70 = vld [vmem:[#allocation7] sm:$0xff]
    %v71 = vld [vmem:[#allocation7 + $0x8] sm:$0xff]
    %v72 = vld [vmem:[#allocation9] sm:$0xff]
    %v73 = vld [vmem:[#allocation9 + $0x8] sm:$0xff]
    %v74 = vmax.f32 %v68, 0.0
    %v75 = vmax.f32 %v69, 0.0
    %v76 = vmul.f32 %v68, %v70
    %v77 = vmul.f32 %v69, %v71
    %v78 = vsub.f32 %v74, %v76
    %v79 = vsub.f32 %v75, %v77
    %v80 = vand.u32 2147483647, %v68
    %v81 = vand.u32 2147483647, %v69
    %v82 = vsub.f32 0.0, %v80
    %v83 = vsub.f32 0.0, %v81
    %v84 = vmul.f32 %v82, 1.442695
    %v85 = vpow.pop %v84
    %v86 = vmul.f32 %v83, 1.442695
    %v87 = vpow.pop %v86
    %v88 = vadd.f32 %v85, 1.0
    %v89 = vlog2.pop %v88
    %v90 = vmul.f32 %v89, 0.6931472
    %v91 = vmul.f32 -0.5, %v85
    %v92 = vadd.f32 %v91, 1.0
    %v93 = vmul.f32 %v92, %v85
    %v94 = vand.u32 2147483647, %v85
    %vm95 = vcmp.lt.f32.partialorder %v94, 0.0004427343
    %v96 = vsel %vm95, %v93, %v90
    %v97 = vadd.f32 %v87, 1.0
    %v98 = vlog2.pop %v97
    %v99 = vmul.f32 %v98, 0.6931472
    %v100 = vmul.f32 -0.5, %v87
    %v101 = vadd.f32 %v100, 1.0
    %v102 = vmul.f32 %v101, %v87
    %v103 = vand.u32 2147483647, %v87
    %vm104 = vcmp.lt.f32.partialorder %v103, 0.0004427343
    %v105 = vsel %vm104, %v102, %v99
    %v106 = vadd.f32 %v78, %v96
    %v107 = vadd.f32 %v79, %v105
    %s108 = smul.u32 0, 16
    %v109 = vlaneseq
    %v110 = vshrl.u32 %v109, 7
    %v111 = vadd.s32 %v110, 8
    %v112 = vstv %s108
    %v113 = vadd.s32 %v112, %v110
    %v114 = vadd.s32 %v112, %v111
    %vm115 = vcmp.lt.s32.totalorder %v113, 16
    %vm116 = vcmp.lt.s32.totalorder %v114, 16
    %v117 = vmul.f32 %v72, %v106
    %v118 = vmul.f32 %v73, %v107
    %v119 = vsel %vm115, %v117, 0.0
    %v120 = vsel %vm116, %v118, 0.0
    %vm121 = vcmp.ne.f32.partialorder %v72, 0.0
    %vm122 = vcmp.ne.f32.partialorder %v73, 0.0
    %vm123 = vmand %vm115, %vm121
    %vm124 = vmand %vm116, %vm122
    %v125 = vsel %vm123, 1.0, 0.0
    %v126 = vsel %vm124, 1.0, 0.0
    %v127 = vld [vmem:[#allocation2] sm:$0xff]
    %v128 = vadd.f32 %v119, %v120
    %v129 = vadd.f32 %v127, %v128
    %130 = vst [vmem:[#allocation2] sm:$0xff] %v129
    %v131 = vld [vmem:[#allocation3] sm:$0xff]
    %v132 = vadd.f32 %v125, %v126
    %v133 = vadd.f32 %v131, %v132
    %134 = vst [vmem:[#allocation3] sm:$0xff] %v133
    // Predicated region
    $region30: #{tpu_custom_call.1} parent=1 // pred_check
      %p135 = pneg %p62
    $region31: #{tpu_custom_call.1} parent=1 // pred_check_branch
      %137 = sbr.rel (%p135) target = $region33
    $region32: #{tpu_custom_call.1} parent=1 // pred_region
      %v138 = vld [vmem:[#allocation2] sm:$0xff]
      %139 = vadd.xlane.f32.xlu0 %v138
      %v140 = vpop.xlane.xlu0 %139
      %v141 = vrot.slane %v140, 4
      %v142 = vadd.f32 %v140, %v141
      %v143 = vrot.slane %v142, 2
      %v144 = vadd.f32 %v142, %v143
      %v145 = vrot.slane %v144, 1
      %v146 = vadd.f32 %v144, %v145
      %s147 = vtos %v146
      %v148 = vld [vmem:[#allocation3] sm:$0xff]
      %149 = vadd.xlane.f32.xlu0 %v148
      %v150 = vpop.xlane.xlu0 %149
      %v151 = vrot.slane %v150, 4
      %v152 = vadd.f32 %v150, %v151
      %v153 = vrot.slane %v152, 2
      %v154 = vadd.f32 %v152, %v153
      %v155 = vrot.slane %v154, 1
      %v156 = vadd.f32 %v154, %v155
      %s157 = vtos %v156
      %v158 = vstv %s157
      %v159 = vrcp.pop %v158
      %v160 = vmul.f32 %v158, %v159
      %v161 = vsub.f32 1.0, %v160
      %v162 = vmul.f32 %v159, %v161
      %v163 = vadd.f32 %v159, %v162
      %vm164 = vweird.f32 %v158
      %vm165 = vweird.f32 %v159
      %vm166 = vmor %vm164, %vm165
      %v167 = vsel %vm166, %v159, %v163
      %v168 = vand.u32 2147483647, %v158
      %vm169 = vcmp.eq.f32.partialorder %v168, 8.507059e+37
      %v170 = vand.u32 %v158, 2147483648
      %v171 = vor.u32 1.1754944e-38, %v170
      %v172 = vsel %vm169, %v171, %v167
      %s173 = vtos %v172
      %s174 = smul.f32 %s147, %s173
      %v175 = vstv %s174
      %vm176 = vcmask 0
      %177 = vst.msk [vmem:[#allocation10] sm:$0x1] %vm176, %v175
    $region33: #{tpu_custom_call.1} parent=1 // pred_fallthru
      _
    // Predicated region
    $region34: #{tpu_custom_call.1} parent=1 // pred_check
      _
    $region35: #{tpu_custom_call.1} parent=1 // pred_check_branch
      %179 = sbr.rel (0) target = $region37
    $region36: #{tpu_custom_call.1} parent=1 // pred_region
      %181 = vsyncadd [#allocation6], 0
      %s183 = sshll.u32 [#allocation10], 4
      %s184 = int_to_ptr.vmem [resolvable:$true] %s183
      %s185 = sshll.u32 %s3, 4
      %s186 = int_to_ptr.hbm [resolvable:$true] %s185
      %188 = dma.vmem_to_hbm [thread:$0]  %s184, 16, %s186, [#allocation6]
    $region37: #{tpu_custom_call.1} parent=1 // pred_fallthru
      _
    // Predicated region
    $region38: #{tpu_custom_call.1} parent=1 // pred_check
      _
    $region39: #{tpu_custom_call.1} parent=1 // pred_check_branch
      %190 = sbr.rel (0) target = $region41
    $region40: #{tpu_custom_call.1} parent=1 // pred_region
      %192 = dma.done [#allocation6], 16
    $region41: #{tpu_custom_call.1} parent=1 // pred_fallthru
      _
    %193 = vsyncpa [#allocation5], 1
    %194 = vsyncpa [#allocation8], 1
    %195 = vsyncpa [#allocation6], 1

</llo_original>
